<compile_context>
chip_gen: v7x
topology: tpu7x:2x2x1
jax: 0.10.0
libtpu: 0.0.40
codegen_flags: <defaults>
</compile_context>

<pallas_src>
import jax
import jax.numpy as jnp
from jax.experimental import pallas as pl
from jax.experimental.pallas import tpu as pltpu


# -----------------------------------------------------------------------------
# Primary kernel: one whole-array HBM -> HBM DMA (no grid, no VMEM staging).
# -----------------------------------------------------------------------------
def _identity_dma_kernel(x_hbm_ref, o_hbm_ref, sem):
    copy = pltpu.make_async_copy(x_hbm_ref, o_hbm_ref, sem)
    copy.start()
    copy.wait()


def _identity_copy_dma(x):
    return pl.pallas_call(
        _identity_dma_kernel,
        out_shape=jax.ShapeDtypeStruct(x.shape, x.dtype),
        in_specs=[pl.BlockSpec(memory_space=pl.ANY)],
        out_specs=pl.BlockSpec(memory_space=pl.ANY),
        scratch_shapes=[pltpu.SemaphoreType.DMA],
    )(x)


# -----------------------------------------------------------------------------
# Secondary kernel: lane-dense, byte-budgeted VMEM-tiled copy.
# -----------------------------------------------------------------------------
def _identity_tile_kernel(x_ref, o_ref):
    o_ref[...] = x_ref[...]


def _identity_copy_tiled(x):
    orig_shape = x.shape
    n = x.size

    # Lane-dense 2D view: identity does not care about logical layout, so pick
    # the widest 128-multiple lane width that divides the element count.  This
    # avoids masked vst.msk partial stores when the real last dim < 128.
    x2 = None
    for width in (1024, 512, 256, 128):
        if n % width == 0:
            x2 = x.reshape(-1, width)
            break
    if x2 is None:
        x2 = x.reshape(-1, orig_shape[-1]) if x.ndim >= 2 else x.reshape(1, -1)
    R, C = x2.shape

    # Byte-budgeted row tile (~2 MiB): big enough to amortize the ~0.35 us
    # per-grid-step overhead, small enough that double-buffered input + output
    # (4 live buffers ~ 8 MiB) stays well under the v5e 16 MiB scoped-VMEM
    # default and inside v7x's 64 MiB physical VMEM.
    itemsize = x2.dtype.itemsize
    # Sublane packing: sub-32-bit dtypes pack along sublanes (bf16 -> 16 rows,
    # int8/fp8 -> 32 rows per native tile).  Align row tiles to that.
    sublane_align = 8 * max(1, 4 // max(1, itemsize))
    tr = max(1, (2 * 1024 * 1024) // max(1, C * itemsize))
    if tr < R:
        align = max(sublane_align, 32 if tr >= 32 else 8)
        tr = max(sublane_align, tr - (tr % align))
        tr = min(tr, R)
    else:
        tr = R  # whole array fits in a single block (block == full dim is OK)

    grid = (pl.cdiv(R, tr),)
    out2 = pl.pallas_call(
        _identity_tile_kernel,
        out_shape=jax.ShapeDtypeStruct((R, C), x2.dtype),
        grid=grid,
        in_specs=[pl.BlockSpec((tr, C), lambda i: (i, 0))],
        out_specs=pl.BlockSpec((tr, C), lambda i: (i, 0)),
        compiler_params=pltpu.CompilerParams(
            # Row blocks are independent -> shard across v7x's 2 TensorCores.
            dimension_semantics=("parallel",),
        ),
    )(x2)
    return out2.reshape(orig_shape)


# -----------------------------------------------------------------------------
# Module wrapper
# -----------------------------------------------------------------------------
def identity_map(x, *args, force_tiled=False, **kwargs):
    """Pallas equivalent of IdentityMap.forward(x, *args, **kwargs) -> x."""
    del args, kwargs  # IdentityMap ignores extra arguments.
    x = jnp.asarray(x)
    if x.ndim == 0 or x.size == 0:
        # Degenerate inputs: the true no-op path (nothing to copy / tile).
        return x
    if force_tiled:
        return _identity_copy_tiled(x)
    return _identity_copy_dma(x)


class IdentityMapPallas:
    """Mirror of the PyTorch IdentityMap module (no parameters)."""

    def __init__(self):
        pass  # IdentityMap has no parameters to initialize.

    def __call__(self, x, *args, **kwargs):
        return identity_map(x, *args, **kwargs)

    @property
    def config(self):
        return {"mm_projector_type": "identity"}


if __name__ == "__main__":
    key = jax.random.PRNGKey(0)
    # Typical projector input: (batch, seq, hidden) visual features.
    x = jax.random.normal(key, (2, 8, 32), dtype=jnp.float32)

    module = IdentityMapPallas()

    # Primary path: whole-array HBM->HBM DMA.
    y = jax.block_until_ready(module(x))
    assert y.shape == x.shape and y.dtype == x.dtype
    assert bool(jnp.all(y == x))

    # Secondary path: lane-dense, byte-budgeted VMEM-tiled copy.
    y_tiled = jax.block_until_ready(identity_map(x, force_tiled=True))
    assert y_tiled.shape == x.shape and y_tiled.dtype == x.dtype
    assert bool(jnp.all(y_tiled == x))

    # Odd, non-128-divisible shape + bf16 exercises the layout fallbacks.
    x_odd = jax.random.normal(jax.random.PRNGKey(1), (3, 7, 5), dtype=jnp.bfloat16)
    y_odd = jax.block_until_ready(module(x_odd))
    assert y_odd.shape == x_odd.shape and y_odd.dtype == x_odd.dtype
    assert bool(jnp.all(y_odd == x_odd))
    y_odd_tiled = jax.block_until_ready(identity_map(x_odd, force_tiled=True))
    assert bool(jnp.all(y_odd_tiled == x_odd))

    assert module.config == {"mm_projector_type": "identity"}
    print("KERNEL_OK")
</pallas_src>

<mosaic_0001>
module attributes {stable_mosaic.version = 11 : i64} {
  func.func @_identity_dma_kernel(%arg0: memref<2x8x32xf32, #tpu.memory_space<any>>, %arg1: memref<2x8x32xf32, #tpu.memory_space<any>>, %arg2: memref<!tpu.dma_semaphore, #tpu.memory_space<semaphore_mem>>) attributes {dimension_semantics = [], scalar_prefetch = 0 : i64, scratch_operands = 1 : i64, tpu.core_type = #tpu.core_type<tc>} {
    tpu.enqueue_dma source(%arg0 : memref<2x8x32xf32, #tpu.memory_space<any>>) target(%arg1 : memref<2x8x32xf32, #tpu.memory_space<any>>) target_semaphore(%arg2 : memref<!tpu.dma_semaphore, #tpu.memory_space<semaphore_mem>>)
    tpu.wait_dma2 semaphore(%arg2 : memref<!tpu.dma_semaphore, #tpu.memory_space<semaphore_mem>>) src(%arg0 : memref<2x8x32xf32, #tpu.memory_space<any>>) dst(%arg1 : memref<2x8x32xf32, #tpu.memory_space<any>>)
    return
  }
}

</mosaic_0001>

<llo_original>
// kernel: tpu_custom_call.1
$region0: #{tpu_custom_call.1}
  #allocation0 [shape = 'u32[]', space=smem, size = 0x4, offset = 0x4, fixed_abs, tag = 'smem constant byte address 0x4 - core index']
  #allocation1 [shape = 'u32[144,128]{1,0:T(1,128)}', space=vmem, size = 0x12000, scoped, tag = 'internal scratch']
  #allocation2 [shape = 's32[1]{0}', space=sflag, size = 0x4, scoped, tag = 'scratch operand']
  #allocation3 [shape = 's32[]', space=sflag, size = 0x4, offset = 0, fixed_abs, tag = 'sflag constant byte address 0x0 - dummy sync flag']
  #allocation4 [shape = 'u32[0]{0}', space=smem, size = 0, offset = 0, fixed_abs, tag = 'smem constant byte address 0x0 - null']
  %s0 = inlined_call_operand.hbm [shape: f32[2,8,32], index: 0, kind: input, shape index: {}]
  %s1 = inlined_call_operand.hbm [shape: f32[2,8,32], index: 1, kind: output, shape index: {}]
  %s2 = sld [smem:[#allocation0]]
  $region2: #{tpu_custom_call.1} parent=0
    _
  %s4 = ssub.s32 1, %s2
  %s5 = scalar_select 0, %s4, %s2
  %s7 = sshll.u32 1, 14
  %s8 = sxor.u32 4294967295, %s7
  %s11 = sshll.u32 3, 24
  %s12 = sxor.u32 4294967295, %s11
  %s13 = sand.u32 0, %s12
  %s15 = sor.u32 %s13, 0
  %18 = dma.general %s0, 256, %s1, [#allocation2], [#allocation3], [#allocation4], %s15, 0
  %s19 = smul.u32 2, 8
  %s20 = smul.u32 %s19, 1
  %s21 = sshll.u32 %s20, 4
  %22 = dma.done [#allocation2], %s21
  %23 = vsyncmov [#allocation2]
  %s24 = vpop.sfrf %23
  %p25 = scmp.eq.s32.totalorder %s24, 0
  %p26 = pneg %p25
  %28 = shalt.err (%p26)

</llo_original>
